<compile_context>
chip_gen: v7x
topology: tpu7x:2x2x1
jax: 0.10.0
libtpu: 0.0.40
codegen_flags: <defaults>
</compile_context>

<pallas_src>
import functools

import jax
import jax.numpy as jnp
from jax import lax
from jax.experimental import pallas as pl
from jax.experimental.pallas import tpu as pltpu


# ---------------------------------------------------------------------------
# Fused Pallas kernel: one block-diag matmul -> BN stats -> BN apply -> ReLU
# ---------------------------------------------------------------------------
def _fused_deconv_bn_relu_kernel(p_ref, w_ref, gamma_ref, beta_ref, o_ref, *,
                                 n_phase, c_out, count, eps):
    """
    p_ref:     (A*K, NM)      f32  phase-stacked im2col patches, NM = N*Hq*Wq
    w_ref:     (A*Cout, A*K)  f32  block-diagonal per-phase weight matrices
    gamma_ref: (Cout, 1)      f32
    beta_ref:  (Cout, 1)      f32
    o_ref:     (A*Cout, NM)   f32  normalized + ReLU'd activations (lane dim NM)
    """
    # Single MXU matmul for the whole problem (all phases, all batches).
    y = jnp.dot(w_ref[...], p_ref[...], preferred_element_type=jnp.float32)
    # Stage the raw conv activations in the VMEM-resident output (no HBM cost).
    o_ref[...] = y

    # BatchNorm training-mode statistics.  Fold the A phase row-blocks with
    # elementwise VPU adds; only TWO cross-lane (XLU) reductions in total.
    part_sum = o_ref[pl.ds(0, c_out), :]
    part_sq = part_sum * part_sum
    for a in range(1, n_phase):
        blk = o_ref[pl.ds(a * c_out, c_out), :]
        part_sum = part_sum + blk
        part_sq = part_sq + blk * blk

    inv_count = 1.0 / count
    mean = jnp.sum(part_sum, axis=-1, keepdims=True) * inv_count      # (Cout,1)
    # One-pass E[y^2]-E[y]^2 variance, clamped at 0.  Fine at this scale;
    # TODO(synk): switch to two-pass/Welford for the tiled large-count variant.
    var = jnp.maximum(
        jnp.sum(part_sq, axis=-1, keepdims=True) * inv_count - mean * mean,
        0.0)
    scale = gamma_ref[...] * lax.rsqrt(var + eps)                      # (Cout,1)
    shift = beta_ref[...] - mean * scale                               # (Cout,1)

    # Apply BN + ReLU in place, one phase row-block at a time (bounded vregs).
    for a in range(n_phase):
        blk = o_ref[pl.ds(a * c_out, c_out), :]
        o_ref[pl.ds(a * c_out, c_out), :] = jnp.maximum(
            blk * scale + shift, 0.0).astype(o_ref.dtype)


# ---------------------------------------------------------------------------
# Patch construction (JAX-level glue; tiny compared to the kernel work)
# ---------------------------------------------------------------------------
def _subpixel_patches(x, weight, kernel_size, stride, padding, Hout, Wout):
    """Zero-free im2col for ConvTranspose2d via stride-phase decomposition.

    Returns
      patches: (A, K_eff, N*Hq*Wq)  with A = s*s, K_eff = Cin*(k//s)**2
      w_mats:  (A, Cout, K_eff)
    Phase index g = r_h*s + r_w covers output pixels (s*j + r_h, s*i + r_w).
    Lane (column) index is n*Hq*Wq + j*Wq + i  (batch collapsed into lanes).
    """
    N, Cin, H, W = x.shape
    Cout = weight.shape[1]
    k, s, p = kernel_size, stride, padding
    T = k // s
    Hq, Wq = Hout // s, Wout // s

    # Output row oh = s*j + r reads input rows j + c(r) - t, t in [0, T).
    c = [(r + p) // s for r in range(s)]
    o_min = c[0] - (T - 1)
    o_max = c[-1]
    pad_lo = max(0, -o_min)
    pad_hi_h = max(0, (Hq - 1) + o_max - (H - 1))
    pad_hi_w = max(0, (Wq - 1) + o_max - (W - 1))
    xp = jnp.pad(x, ((0, 0), (0, 0),
                     (pad_lo, pad_hi_h), (pad_lo, pad_hi_w)))

    patches, w_mats = [], []
    for r_h in range(s):
        for r_w in range(s):
            taps = []
            for t_h in range(T):
                oh0 = pad_lo + c[r_h] - t_h
                for t_w in range(T):
                    ow0 = pad_lo + c[r_w] - t_w
                    taps.append(xp[:, :, oh0:oh0 + Hq, ow0:ow0 + Wq])
            ph = jnp.stack(taps, axis=2)                # (N, Cin, T*T, Hq, Wq)
            ph = ph.transpose(1, 2, 0, 3, 4)            # (Cin, T*T, N, Hq, Wq)
            patches.append(ph.reshape(Cin * T * T, N * Hq * Wq))
            a_h = (r_h + p) % s
            a_w = (r_w + p) % s
            wm = weight[:, :, a_h::s, a_w::s]           # (Cin, Cout, T, T)
            wm = wm.transpose(1, 0, 2, 3).reshape(Cout, Cin * T * T)
            w_mats.append(wm)
    return jnp.stack(patches, axis=0), jnp.stack(w_mats, axis=0)


def _dilated_patches(x, weight, kernel_size, stride, padding, output_padding,
                     Hout, Wout):
    """Fallback (general shapes): zero-dilated im2col, single 'phase'."""
    N, Cin, H, W = x.shape
    Cout = weight.shape[1]
    k, s = kernel_size, stride
    Hd, Wd = (H - 1) * s + 1, (W - 1) * s + 1
    xd = jnp.zeros((N, Cin, Hd, Wd), x.dtype).at[:, :, ::s, ::s].set(x)
    ph = k - 1 - padding
    xp = jnp.pad(xd, ((0, 0), (0, 0),
                      (ph, ph + output_padding), (ph, ph + output_padding)))
    taps = []
    for dh in range(k):
        for dw in range(k):
            taps.append(xp[:, :, dh:dh + Hout, dw:dw + Wout])
    patches = jnp.stack(taps, axis=2)                   # (N, Cin, k*k, Ho, Wo)
    patches = patches.transpose(1, 2, 0, 3, 4).reshape(Cin * k * k,
                                                       N * Hout * Wout)
    w_mat = jnp.flip(weight, (2, 3)).transpose(1, 0, 2, 3).reshape(Cout,
                                                                   Cin * k * k)
    return patches[None], w_mat[None]


# ---------------------------------------------------------------------------
# DeconvBlock forward
# ---------------------------------------------------------------------------
def deconv_block_forward(x, weight, gamma, beta, *, kernel_size, stride,
                         padding, output_padding, eps=1e-5):
    """
    x:      (N, Cin, H, W)        float32, NCHW (PyTorch convention)
    weight: (Cin, Cout, kh, kw)   ConvTranspose2d weight layout
    gamma, beta: (Cout,)          BatchNorm2d affine params
    Returns (N, Cout, Hout, Wout) float32.
    """
    N, Cin, H, W = x.shape
    Cout = weight.shape[1]
    k, s = kernel_size, stride
    Hout = (H - 1) * s - 2 * padding + k + output_padding
    Wout = (W - 1) * s - 2 * padding + k + output_padding

    use_subpixel = (k % s == 0) and (Hout % s == 0) and (Wout % s == 0)
    if use_subpixel:
        patches, w_mats = _subpixel_patches(x, weight, k, s, padding,
                                            Hout, Wout)
        sh = sw = s
    else:
        patches, w_mats = _dilated_patches(x, weight, k, s, padding,
                                           output_padding, Hout, Wout)
        sh = sw = 1
    Hq, Wq = Hout // sh, Wout // sw

    A, K, NM = patches.shape                           # phases, K_eff, N*Hq*Wq

    # f32 MXU inputs (overhead-bound problem; bf16 bought nothing, cost accuracy)
    patches = patches.astype(jnp.float32)
    p_bd = patches.reshape(A * K, NM)

    # Block-diagonal phase packing: one matmul for the whole problem.
    w_bd = jnp.zeros((A * Cout, A * K), jnp.float32)
    for a in range(A):
        w_bd = w_bd.at[a * Cout:(a + 1) * Cout,
                       a * K:(a + 1) * K].set(w_mats[a].astype(jnp.float32))

    gamma2 = gamma.reshape(Cout, 1).astype(jnp.float32)
    beta2 = beta.reshape(Cout, 1).astype(jnp.float32)
    count = float(N * Hout * Wout)

    # --- generation-aware VMEM budget (accounts for Pallas double-buffering) --
    try:
        info = pltpu.get_tpu_info()
        vmem_cap = int(getattr(info, "vmem_capacity_bytes", 64 * 1024 * 1024))
    except Exception:                                  # pragma: no cover
        vmem_cap = 64 * 1024 * 1024                    # v7x per-TC physical
    out_bytes = A * Cout * NM * 4
    io_bytes = (p_bd.size * 4 + w_bd.size * 4 + gamma2.size * 4
                + beta2.size * 4 + out_bytes)
    vmem_need = 2 * io_bytes + out_bytes               # 2x buffering + live y
    vmem_limit = min(int(0.9 * vmem_cap), max(2 * vmem_need, 16 * 1024 * 1024))
    if vmem_need > vmem_limit:
        # TODO(synk): tiled variant (parallel grid over batch/spatial tiles with
        # a cross-tile stats combine) for working sets that exceed VMEM.
        raise NotImplementedError(
            "fused DeconvBlock kernel: working set too large for one VMEM step")

    out = pl.pallas_call(
        functools.partial(_fused_deconv_bn_relu_kernel,
                          n_phase=A, c_out=Cout, count=count, eps=eps),
        out_shape=jax.ShapeDtypeStruct((A * Cout, NM), jnp.float32),
        grid=(1,),
        in_specs=[
            pl.BlockSpec((A * K, NM), lambda i: (0, 0)),
            pl.BlockSpec((A * Cout, A * K), lambda i: (0, 0)),
            pl.BlockSpec((Cout, 1), lambda i: (0, 0)),
            pl.BlockSpec((Cout, 1), lambda i: (0, 0)),
        ],
        out_specs=pl.BlockSpec((A * Cout, NM), lambda i: (0, 0)),
        compiler_params=pltpu.CompilerParams(
            dimension_semantics=("arbitrary",),
            vmem_limit_bytes=int(vmem_limit)),
    )(p_bd, w_bd, gamma2, beta2)

    # De-interleave phases: (sh, sw, Cout, N, Hq, Wq) -> (N, Cout, Hout, Wout).
    out = out.reshape(sh, sw, Cout, N, Hq, Wq)
    out = out.transpose(3, 2, 4, 0, 5, 1).reshape(N, Cout, Hout, Wout)
    return out


# ---------------------------------------------------------------------------
# Pure-JAX reference (for the built-in correctness check)
# ---------------------------------------------------------------------------
def _reference(x, weight, gamma, beta, *, kernel_size, stride, padding,
               output_padding, eps=1e-5):
    kh = kw = kernel_size
    w_conv = jnp.flip(weight, (2, 3)).transpose(1, 0, 2, 3)  # (Cout,Cin,kh,kw)
    y = lax.conv_general_dilated(
        x, w_conv, window_strides=(1, 1),
        padding=[(kh - 1 - padding, kh - 1 - padding + output_padding),
                 (kw - 1 - padding, kw - 1 - padding + output_padding)],
        lhs_dilation=(stride, stride),
        dimension_numbers=('NCHW', 'OIHW', 'NCHW'))
    mean = jnp.mean(y, axis=(0, 2, 3), keepdims=True)
    var = jnp.mean((y - mean) ** 2, axis=(0, 2, 3), keepdims=True)
    yn = (y - mean) * lax.rsqrt(var + eps)
    yn = yn * gamma.reshape(1, -1, 1, 1) + beta.reshape(1, -1, 1, 1)
    return jnp.maximum(yn, 0.0)


# ---------------------------------------------------------------------------
if __name__ == "__main__":
    # DeconvBlock(in_ch=4, out_ch=8, kernel_size=4, stride=2, padding=1,
    #             bias=False, norm='batch', activation='relu')
    in_ch, out_ch, ksize, stride, padding, out_pad = 4, 8, 4, 2, 1, 0

    key = jax.random.PRNGKey(0)
    kx, kw = jax.random.split(key)
    x = jax.random.normal(kx, (2, in_ch, 16, 16), dtype=jnp.float32)
    # ConvTranspose2d weight: (in_ch, out_ch, kh, kw); deterministic init.
    weight = 0.1 * jax.random.normal(kw, (in_ch, out_ch, ksize, ksize),
                                     dtype=jnp.float32)
    # BatchNorm2d default init: weight=1, bias=0.
    gamma = jnp.ones((out_ch,), jnp.float32)
    beta = jnp.zeros((out_ch,), jnp.float32)

    out = deconv_block_forward(x, weight, gamma, beta,
                               kernel_size=ksize, stride=stride,
                               padding=padding, output_padding=out_pad)
    out = jax.block_until_ready(out)

    ref = _reference(x, weight, gamma, beta,
                     kernel_size=ksize, stride=stride,
                     padding=padding, output_padding=out_pad)
    assert out.shape == (2, out_ch, 32, 32), out.shape
    max_err = float(jnp.max(jnp.abs(out - ref)))
    assert max_err < 2e-2, max_err
    print("KERNEL_OK")
</pallas_src>

<mosaic_0001>
module attributes {stable_mosaic.version = 11 : i64} {
  func.func @_fused_deconv_bn_relu_kernel(%arg0: i32, %arg1: memref<64x512xf32, #tpu.memory_space<vmem>>, %arg2: memref<32x64xf32, #tpu.memory_space<vmem>>, %arg3: memref<8x1xf32, #tpu.memory_space<vmem>>, %arg4: memref<8x1xf32, #tpu.memory_space<vmem>>, %arg5: memref<32x512xf32, #tpu.memory_space<vmem>>) attributes {dimension_semantics = [#tpu.dimension_semantics<arbitrary>], iteration_bounds = array<i64: 1>, scalar_prefetch = 0 : i64, scratch_operands = 0 : i64, tpu.core_type = #tpu.core_type<tc>, window_params = [{pipeline_mode = #tpu.pipeline_mode<synchronous>, transform_indices = @transform_0, window_bounds = array<i64: 64, 512>}, {pipeline_mode = #tpu.pipeline_mode<synchronous>, transform_indices = @transform_1, window_bounds = array<i64: 32, 64>}, {pipeline_mode = #tpu.pipeline_mode<synchronous>, transform_indices = @transform_2, window_bounds = array<i64: 8, 1>}, {pipeline_mode = #tpu.pipeline_mode<synchronous>, transform_indices = @transform_3, window_bounds = array<i64: 8, 1>}, {pipeline_mode = #tpu.pipeline_mode<synchronous>, transform_indices = @transform_4, window_bounds = array<i64: 32, 512>}]} {
    %c0 = arith.constant 0 : index
    %c0_0 = arith.constant 0 : index
    %0 = vector.load %arg2[%c0, %c0_0] : memref<32x64xf32, #tpu.memory_space<vmem>>, vector<32x64xf32>
    %c0_1 = arith.constant 0 : index
    %c0_2 = arith.constant 0 : index
    %1 = vector.load %arg1[%c0_1, %c0_2] : memref<64x512xf32, #tpu.memory_space<vmem>>, vector<64x512xf32>
    %cst = arith.constant dense<0.000000e+00> : vector<32x512xf32>
    %2 = tpu.matmul %0, %1, %cst {dimension_numbers = #tpu.dot_dimension_numbers<[1], [0], [0], [1], [0, 0, 1, 1], [], []>} : vector<32x64xf32>, vector<64x512xf32>, vector<32x512xf32> -> vector<32x512xf32>
    %c0_3 = arith.constant 0 : index
    %c0_4 = arith.constant 0 : index
    %3 = vector.load %arg5[%c0_3, %c0_4] : memref<32x512xf32, #tpu.memory_space<vmem>>, vector<32x512xf32>
    tpu.vector_store %arg5[%c0_3, %c0_4], %2 {strides = array<i32>} : memref<32x512xf32, #tpu.memory_space<vmem>>, vector<32x512xf32>,
    %c0_5 = arith.constant 0 : index
    %c0_6 = arith.constant 0 : index
    %4 = vector.load %arg5[%c0_5, %c0_6] : memref<32x512xf32, #tpu.memory_space<vmem>>, vector<8x512xf32>
    %5 = arith.mulf %4, %4 : vector<8x512xf32>
    %c8 = arith.constant 8 : index
    %c0_7 = arith.constant 0 : index
    %6 = vector.load %arg5[%c8, %c0_7] : memref<32x512xf32, #tpu.memory_space<vmem>>, vector<8x512xf32>
    %7 = arith.addf %4, %6 : vector<8x512xf32>
    %8 = arith.mulf %6, %6 : vector<8x512xf32>
    %9 = arith.addf %5, %8 : vector<8x512xf32>
    %c16 = arith.constant 16 : index
    %c0_8 = arith.constant 0 : index
    %10 = vector.load %arg5[%c16, %c0_8] : memref<32x512xf32, #tpu.memory_space<vmem>>, vector<8x512xf32>
    %11 = arith.addf %7, %10 : vector<8x512xf32>
    %12 = arith.mulf %10, %10 : vector<8x512xf32>
    %13 = arith.addf %9, %12 : vector<8x512xf32>
    %c24 = arith.constant 24 : index
    %c0_9 = arith.constant 0 : index
    %14 = vector.load %arg5[%c24, %c0_9] : memref<32x512xf32, #tpu.memory_space<vmem>>, vector<8x512xf32>
    %15 = arith.addf %11, %14 : vector<8x512xf32>
    %16 = arith.mulf %14, %14 : vector<8x512xf32>
    %17 = arith.addf %13, %16 : vector<8x512xf32>
    %cst_10 = arith.constant dense<0.000000e+00> : vector<8xf32>
    %18 = vector.multi_reduction <add>, %15, %cst_10 [1] : vector<8x512xf32> to vector<8xf32>
    %19 = vector.shape_cast %18 : vector<8xf32> to vector<8x1xf32>
    %cst_11 = arith.constant 4.8828125E-4 : f32
    %20 = vector.broadcast %cst_11 : f32 to vector<8x1xf32>
    %21 = arith.mulf %19, %20 : vector<8x1xf32>
    %cst_12 = arith.constant dense<0.000000e+00> : vector<8xf32>
    %22 = vector.multi_reduction <add>, %17, %cst_12 [1] : vector<8x512xf32> to vector<8xf32>
    %23 = vector.shape_cast %22 : vector<8xf32> to vector<8x1xf32>
    %cst_13 = arith.constant 4.8828125E-4 : f32
    %24 = vector.broadcast %cst_13 : f32 to vector<8x1xf32>
    %25 = arith.mulf %23, %24 : vector<8x1xf32>
    %26 = arith.mulf %21, %21 : vector<8x1xf32>
    %27 = arith.subf %25, %26 : vector<8x1xf32>
    %cst_14 = arith.constant 0.000000e+00 : f32
    %28 = vector.broadcast %cst_14 : f32 to vector<8x1xf32>
    %29 = arith.maximumf %27, %28 : vector<8x1xf32>
    %c0_15 = arith.constant 0 : index
    %c0_16 = arith.constant 0 : index
    %30 = vector.load %arg3[%c0_15, %c0_16] : memref<8x1xf32, #tpu.memory_space<vmem>>, vector<8x1xf32>
    %cst_17 = arith.constant 9.99999974E-6 : f32
    %31 = vector.broadcast %cst_17 : f32 to vector<8x1xf32>
    %32 = arith.addf %29, %31 : vector<8x1xf32>
    %33 = math.rsqrt %32 : vector<8x1xf32>
    %34 = arith.mulf %30, %33 : vector<8x1xf32>
    %c0_18 = arith.constant 0 : index
    %c0_19 = arith.constant 0 : index
    %35 = vector.load %arg4[%c0_18, %c0_19] : memref<8x1xf32, #tpu.memory_space<vmem>>, vector<8x1xf32>
    %36 = arith.mulf %21, %34 : vector<8x1xf32>
    %37 = arith.subf %35, %36 : vector<8x1xf32>
    %c0_20 = arith.constant 0 : index
    %c0_21 = arith.constant 0 : index
    %38 = vector.load %arg5[%c0_20, %c0_21] : memref<32x512xf32, #tpu.memory_space<vmem>>, vector<8x512xf32>
    %39 = vector.broadcast %34 : vector<8x1xf32> to vector<8x512xf32>
    %40 = arith.mulf %38, %39 : vector<8x512xf32>
    %41 = vector.broadcast %37 : vector<8x1xf32> to vector<8x512xf32>
    %42 = arith.addf %40, %41 : vector<8x512xf32>
    %cst_22 = arith.constant 0.000000e+00 : f32
    %43 = vector.broadcast %cst_22 : f32 to vector<8x512xf32>
    %44 = arith.maximumf %42, %43 : vector<8x512xf32>
    %c0_23 = arith.constant 0 : index
    %c0_24 = arith.constant 0 : index
    %45 = vector.load %arg5[%c0_23, %c0_24] : memref<32x512xf32, #tpu.memory_space<vmem>>, vector<8x512xf32>
    tpu.vector_store %arg5[%c0_23, %c0_24], %44 {strides = array<i32>} : memref<32x512xf32, #tpu.memory_space<vmem>>, vector<8x512xf32>,
    %c8_25 = arith.constant 8 : index
    %c0_26 = arith.constant 0 : index
    %46 = vector.load %arg5[%c8_25, %c0_26] : memref<32x512xf32, #tpu.memory_space<vmem>>, vector<8x512xf32>
    %47 = vector.broadcast %34 : vector<8x1xf32> to vector<8x512xf32>
    %48 = arith.mulf %46, %47 : vector<8x512xf32>
    %49 = vector.broadcast %37 : vector<8x1xf32> to vector<8x512xf32>
    %50 = arith.addf %48, %49 : vector<8x512xf32>
    %cst_27 = arith.constant 0.000000e+00 : f32
    %51 = vector.broadcast %cst_27 : f32 to vector<8x512xf32>
    %52 = arith.maximumf %50, %51 : vector<8x512xf32>
    %c8_28 = arith.constant 8 : index
    %c0_29 = arith.constant 0 : index
    %53 = vector.load %arg5[%c8_28, %c0_29] : memref<32x512xf32, #tpu.memory_space<vmem>>, vector<8x512xf32>
    tpu.vector_store %arg5[%c8_28, %c0_29], %52 {strides = array<i32>} : memref<32x512xf32, #tpu.memory_space<vmem>>, vector<8x512xf32>,
    %c16_30 = arith.constant 16 : index
    %c0_31 = arith.constant 0 : index
    %54 = vector.load %arg5[%c16_30, %c0_31] : memref<32x512xf32, #tpu.memory_space<vmem>>, vector<8x512xf32>
    %55 = vector.broadcast %34 : vector<8x1xf32> to vector<8x512xf32>
    %56 = arith.mulf %54, %55 : vector<8x512xf32>
    %57 = vector.broadcast %37 : vector<8x1xf32> to vector<8x512xf32>
    %58 = arith.addf %56, %57 : vector<8x512xf32>
    %cst_32 = arith.constant 0.000000e+00 : f32
    %59 = vector.broadcast %cst_32 : f32 to vector<8x512xf32>
    %60 = arith.maximumf %58, %59 : vector<8x512xf32>
    %c16_33 = arith.constant 16 : index
    %c0_34 = arith.constant 0 : index
    %61 = vector.load %arg5[%c16_33, %c0_34] : memref<32x512xf32, #tpu.memory_space<vmem>>, vector<8x512xf32>
    tpu.vector_store %arg5[%c16_33, %c0_34], %60 {strides = array<i32>} : memref<32x512xf32, #tpu.memory_space<vmem>>, vector<8x512xf32>,
    %c24_35 = arith.constant 24 : index
    %c0_36 = arith.constant 0 : index
    %62 = vector.load %arg5[%c24_35, %c0_36] : memref<32x512xf32, #tpu.memory_space<vmem>>, vector<8x512xf32>
    %63 = vector.broadcast %34 : vector<8x1xf32> to vector<8x512xf32>
    %64 = arith.mulf %62, %63 : vector<8x512xf32>
    %65 = vector.broadcast %37 : vector<8x1xf32> to vector<8x512xf32>
    %66 = arith.addf %64, %65 : vector<8x512xf32>
    %cst_37 = arith.constant 0.000000e+00 : f32
    %67 = vector.broadcast %cst_37 : f32 to vector<8x512xf32>
    %68 = arith.maximumf %66, %67 : vector<8x512xf32>
    %c24_38 = arith.constant 24 : index
    %c0_39 = arith.constant 0 : index
    %69 = vector.load %arg5[%c24_38, %c0_39] : memref<32x512xf32, #tpu.memory_space<vmem>>, vector<8x512xf32>
    tpu.vector_store %arg5[%c24_38, %c0_39], %68 {strides = array<i32>} : memref<32x512xf32, #tpu.memory_space<vmem>>, vector<8x512xf32>,
    return
  }
  func.func @transform_0(%arg0: i32) -> (i32, i32) {
    %c0_i32 = arith.constant 0 : i32
    %c0_i32_0 = arith.constant 0 : i32
    %c0_i32_1 = arith.constant 0 : i32
    return %c0_i32, %c0_i32_0 : i32, i32
  }
  func.func @transform_1(%arg0: i32) -> (i32, i32) {
    %c0_i32 = arith.constant 0 : i32
    %c0_i32_0 = arith.constant 0 : i32
    %c0_i32_1 = arith.constant 0 : i32
    return %c0_i32, %c0_i32_0 : i32, i32
  }
  func.func @transform_2(%arg0: i32) -> (i32, i32) {
    %c0_i32 = arith.constant 0 : i32
    %c0_i32_0 = arith.constant 0 : i32
    %c0_i32_1 = arith.constant 0 : i32
    return %c0_i32, %c0_i32_0 : i32, i32
  }
  func.func @transform_3(%arg0: i32) -> (i32, i32) {
    %c0_i32 = arith.constant 0 : i32
    %c0_i32_0 = arith.constant 0 : i32
    %c0_i32_1 = arith.constant 0 : i32
    return %c0_i32, %c0_i32_0 : i32, i32
  }
  func.func @transform_4(%arg0: i32) -> (i32, i32) {
    %c0_i32 = arith.constant 0 : i32
    %c0_i32_0 = arith.constant 0 : i32
    %c0_i32_1 = arith.constant 0 : i32
    return %c0_i32, %c0_i32_0 : i32, i32
  }
}

</mosaic_0001>

<llo_original>
// kernel: tpu_custom_call.1
$region0: #{tpu_custom_call.1}
  #allocation0 [shape = 'u32[]', space=smem, size = 0x4, offset = 0x4, fixed_abs, tag = 'smem constant byte address 0x4 - core index']
  #allocation1 [shape = 'u32[144,128]{1,0:T(1,128)}', space=vmem, size = 0x12000, scoped, tag = 'internal scratch']
  %s0 = inlined_call_operand.hbm [shape: f32[64,512], index: 0, kind: input, shape index: {}]
  %s1 = inlined_call_operand.hbm [shape: f32[32,64], index: 1, kind: input, shape index: {}]
  %s2 = inlined_call_operand.vmem [shape: f32[8,1], index: 2, kind: input, shape index: {}]
  %s3 = inlined_call_operand.vmem [shape: f32[8,1], index: 3, kind: input, shape index: {}]
  %s4 = inlined_call_operand.hbm [shape: f32[32,512], index: 4, kind: output, shape index: {}]
  %s5 = sld [smem:[#allocation0]]
  $region34: #{tpu_custom_call.1} parent=0
    _
  %s7 = ssub.s32 1, %s5
  %s8 = scalar_select 0, %s7, %s5
  $region1: #{tpu_custom_call.1} parent=0
    #allocation2 [shape = 'u8[131072]{0}', space=vmem, size = 0x20000, scoped, tag = 'input window, operand 0, single buffered']
    #allocation3 [shape = 's32[1]{0}', space=sflag, size = 0x4, scoped, tag = 'scoped memory for tpu_custom_call.1']
    #allocation4 [shape = 's32[1]{0}', space=sflag, size = 0x4, scoped, tag = 'scoped memory for tpu_custom_call.1']
    #allocation5 [shape = 'u8[16384]{0}', space=vmem, size = 0x4000, scoped, tag = 'input window, operand 1, single buffered']
    #allocation6 [shape = 's32[1]{0}', space=sflag, size = 0x4, scoped, tag = 'scoped memory for tpu_custom_call.1']
    #allocation7 [shape = 'u8[65536]{0}', space=vmem, size = 0x10000, scoped, tag = 'output window, operand 0, single buffered']
    %9 = vsyncpa [#allocation3], 0
    %10 = vsyncpa [#allocation6], 0
    %11 = vsyncpa [#allocation4], 0
    // Predicated region
    $region2: #{tpu_custom_call.1} parent=1 // pred_check
      _
    $region3: #{tpu_custom_call.1} parent=1 // pred_check_branch
      %13 = sbr.rel (0) target = $region5
    $region4: #{tpu_custom_call.1} parent=1 // pred_region
      %s15 = ssub.s32 4096, 4096
      %16 = vsyncadd [#allocation3], %s15
      %s17 = sshll.u32 [#allocation2], 4
      %s18 = int_to_ptr.vmem [resolvable:$true] %s17
      %23 = dma.hbm_to_vmem [thread:$0]  %s0, 4096, %s18, [#allocation3], 512, 512, 32
    $region5: #{tpu_custom_call.1} parent=1 // pred_fallthru
      _
    // Predicated region
    $region6: #{tpu_custom_call.1} parent=1 // pred_check
      _
    $region7: #{tpu_custom_call.1} parent=1 // pred_check_branch
      %25 = sbr.rel (0) target = $region9
    $region8: #{tpu_custom_call.1} parent=1 // pred_region
      %s27 = ssub.s32 512, 512
      %28 = vsyncadd [#allocation6], %s27
      %s29 = sshll.u32 [#allocation5], 4
      %s30 = int_to_ptr.vmem [resolvable:$true] %s29
      %35 = dma.hbm_to_vmem [thread:$0]  %s1, 512, %s30, [#allocation6], 128, 128, 8
    $region9: #{tpu_custom_call.1} parent=1 // pred_fallthru
      _
    // Predicated region
    $region10: #{tpu_custom_call.1} parent=1 // pred_check
      _
    $region11: #{tpu_custom_call.1} parent=1 // pred_check_branch
      %37 = sbr.rel (0) target = $region13
    $region12: #{tpu_custom_call.1} parent=1 // pred_region
      _
    $region13: #{tpu_custom_call.1} parent=1 // pred_fallthru
      _
    // Predicated region
    $region14: #{tpu_custom_call.1} parent=1 // pred_check
      _
    $region15: #{tpu_custom_call.1} parent=1 // pred_check_branch
      %39 = sbr.rel (0) target = $region17
    $region16: #{tpu_custom_call.1} parent=1 // pred_region
      _
    $region17: #{tpu_custom_call.1} parent=1 // pred_fallthru
      _
    // Predicated region
    $region18: #{tpu_custom_call.1} parent=1 // pred_check
      _
    $region19: #{tpu_custom_call.1} parent=1 // pred_check_branch
      %41 = sbr.rel (0) target = $region21
    $region20: #{tpu_custom_call.1} parent=1 // pred_region
      %42 = dma.done [#allocation3], 4096
    $region21: #{tpu_custom_call.1} parent=1 // pred_fallthru
      _
    // Predicated region
    $region22: #{tpu_custom_call.1} parent=1 // pred_check
      _
    $region23: #{tpu_custom_call.1} parent=1 // pred_check_branch
      %44 = sbr.rel (0) target = $region25
    $region24: #{tpu_custom_call.1} parent=1 // pred_region
      %45 = dma.done [#allocation6], 512
    $region25: #{tpu_custom_call.1} parent=1 // pred_fallthru
      _
    %v46 = vld [vmem:[#allocation5] sm:$0xff]
    %v47 = vld [vmem:[#allocation5 + $0x8] sm:$0xff]
    %v48 = vld [vmem:[#allocation5 + $0x10] sm:$0xff]
    %v49 = vld [vmem:[#allocation5 + $0x18] sm:$0xff]
    %v50 = vld [vmem:[#allocation2] sm:$0xff]
    %v51 = vld [vmem:[#allocation2 + $0x8] sm:$0xff]
    %v52 = vld [vmem:[#allocation2 + $0x10] sm:$0xff]
    %v53 = vld [vmem:[#allocation2 + $0x18] sm:$0xff]
    %v54 = vld [vmem:[#allocation2 + $0x20] sm:$0xff]
    %v55 = vld [vmem:[#allocation2 + $0x28] sm:$0xff]
    %v56 = vld [vmem:[#allocation2 + $0x30] sm:$0xff]
    %v57 = vld [vmem:[#allocation2 + $0x38] sm:$0xff]
    %v58 = vld [vmem:[#allocation2 + $0x40] sm:$0xff]
    %v59 = vld [vmem:[#allocation2 + $0x48] sm:$0xff]
    %v60 = vld [vmem:[#allocation2 + $0x50] sm:$0xff]
    %v61 = vld [vmem:[#allocation2 + $0x58] sm:$0xff]
    %v62 = vld [vmem:[#allocation2 + $0x60] sm:$0xff]
    %v63 = vld [vmem:[#allocation2 + $0x68] sm:$0xff]
    %v64 = vld [vmem:[#allocation2 + $0x70] sm:$0xff]
    %v65 = vld [vmem:[#allocation2 + $0x78] sm:$0xff]
    %v66 = vld [vmem:[#allocation2 + $0x80] sm:$0xff]
    %v67 = vld [vmem:[#allocation2 + $0x88] sm:$0xff]
    %v68 = vld [vmem:[#allocation2 + $0x90] sm:$0xff]
    %v69 = vld [vmem:[#allocation2 + $0x98] sm:$0xff]
    %v70 = vld [vmem:[#allocation2 + $0xa0] sm:$0xff]
    %v71 = vld [vmem:[#allocation2 + $0xa8] sm:$0xff]
    %v72 = vld [vmem:[#allocation2 + $0xb0] sm:$0xff]
    %v73 = vld [vmem:[#allocation2 + $0xb8] sm:$0xff]
    %v74 = vld [vmem:[#allocation2 + $0xc0] sm:$0xff]
    %v75 = vld [vmem:[#allocation2 + $0xc8] sm:$0xff]
    %v76 = vld [vmem:[#allocation2 + $0xd0] sm:$0xff]
    %v77 = vld [vmem:[#allocation2 + $0xd8] sm:$0xff]
    %v78 = vld [vmem:[#allocation2 + $0xe0] sm:$0xff]
    %v79 = vld [vmem:[#allocation2 + $0xe8] sm:$0xff]
    %v80 = vld [vmem:[#allocation2 + $0xf0] sm:$0xff]
    %v81 = vld [vmem:[#allocation2 + $0xf8] sm:$0xff]
    %vm82 = vcmask 523264
    %v84 = vsel %vm82, %v46, 0
    %v87 = vsel %vm82, %v47, 0
    %v90 = vsel %vm82, %v48, 0
    %v93 = vsel %vm82, %v49, 0
    %95 = vmatprep.subr.mxu0 %v51
    %96 = vmatpush1.msra.mxu0 %v50
    %97 = vmatprep.subr.mxu0 %v55
    %98 = vmatpush1.msra.mxu0 %v54
    %99 = vmatprep.subr.mxu0 %v59
    %100 = vmatpush1.msra.mxu0 %v58
    %101 = vmatprep.subr.mxu0 %v63
    %102 = vmatpush1.msra.mxu0 %v62
    %103 = vmatprep.subr.mxu0 %v67
    %104 = vmatpush1.msra.mxu0 %v66
    %105 = vmatprep.subr.mxu0 %v71
    %106 = vmatpush1.msra.mxu0 %v70
    %107 = vmatprep.subr.mxu0 %v75
    %108 = vmatpush1.msra.mxu0 %v74
    %109 = vmatprep.subr.mxu0 %v79
    %110 = vmatpush1.msra.mxu0 %v78
    %111 = vmatprep.subr.mxu0 0.0
    %112 = vmatpush1.msra.mxu0 0.0
    %113 = vmatprep.subr.mxu0 0.0
    %114 = vmatpush1.msra.mxu0 0.0
    %115 = vmatprep.subr.mxu0 0.0
    %116 = vmatpush1.msra.mxu0 0.0
    %117 = vmatprep.subr.mxu0 0.0
    %118 = vmatpush1.msra.mxu0 0.0
    %119 = vmatprep.subr.mxu0 0.0
    %120 = vmatpush1.msra.mxu0 0.0
    %121 = vmatprep.subr.mxu0 0.0
    %122 = vmatpush1.msra.mxu0 0.0
    %123 = vmatprep.subr.mxu0 0.0
    %124 = vmatpush1.msra.mxu0 0.0
    %125 = vmatprep.subr.mxu0 0.0
    %126 = vmatpush1.msra.mxu0 0.0
    %127 = vmatprep.subr.mxu0 0.0
    %128 = vmatpush1.msra.mxu0 0.0
    %129 = vmatprep.subr.mxu0 0.0
    %130 = vmatpush1.msra.mxu0 0.0
    %131 = vmatprep.subr.mxu0 0.0
    %132 = vmatpush1.msra.mxu0 0.0
    %133 = vmatprep.subr.mxu0 0.0
    %134 = vmatpush1.msra.mxu0 0.0
    %135 = vmatprep.subr.mxu0 0.0
    %136 = vmatpush1.msra.mxu0 0.0
    %137 = vmatprep.subr.mxu0 0.0
    %138 = vmatpush1.msra.mxu0 0.0
    %139 = vmatprep.subr.mxu0 0.0
    %140 = vmatpush1.msra.mxu0 0.0
    %141 = vmatprep.subr.mxu0 0.0
    %142 = vmatpush1.msra.mxu0 0.0
    %143 = vmatprep.subr.mxu0 0.0
    %144 = vmatpush1.msra.mxu0 0.0
    %145 = vmatprep.subr.mxu0 0.0
    %146 = vmatpush1.msra.mxu0 0.0
    %147 = vmatprep.subr.mxu0 0.0
    %148 = vmatpush1.msra.mxu0 0.0
    %149 = vmatprep.subr.mxu0 0.0
    %150 = vmatpush1.msra.mxu0 0.0
    %151 = vmatprep.subr.mxu0 0.0
    %152 = vmatpush1.msra.mxu0 0.0
    %153 = vmatprep.subr.mxu0 0.0
    %154 = vmatpush1.msra.mxu0 0.0
    %155 = vmatprep.subr.mxu0 0.0
    %156 = vmatpush1.msra.mxu0 0.0
    %157 = vmatprep.subr.mxu0 0.0
    %158 = vmatpush1.msra.mxu0 0.0
    %159 = vmatprep.mubr.f32.mxu0 0.0
    %160 = vmatmul.mubr.f32.gmra.mrb[0].mxu0 %v84
    %v161 = vpop.f32.mrb[0].mxu0
    %v162 = vadd.f32 0.0, %v161
    %v163 = vpop.f32.mrb[0].mxu0
    %v164 = vadd.f32 0.0, %v163
    %165 = vmatprep.mubr.f32.mxu0 0.0
    %166 = vmatmul.mubr.f32.gmra.mrb[0].mxu0 %v87
    %v167 = vpop.f32.mrb[0].mxu0
    %v168 = vadd.f32 0.0, %v167
    %v169 = vpop.f32.mrb[0].mxu0
    %v170 = vadd.f32 0.0, %v169
    %171 = vmatprep.mubr.f32.mxu0 0.0
    %172 = vmatmul.mubr.f32.gmra.mrb[0].mxu0 %v90
    %v173 = vpop.f32.mrb[0].mxu0
    %v174 = vadd.f32 0.0, %v173
    %v175 = vpop.f32.mrb[0].mxu0
    %v176 = vadd.f32 0.0, %v175
    %177 = vmatprep.mubr.f32.mxu0 0.0
    %178 = vmatmul.mubr.f32.gmra.mrb[0].mxu0 %v93
    %v179 = vpop.f32.mrb[0].mxu0
    %v180 = vadd.f32 0.0, %v179
    %v181 = vpop.f32.mrb[0].mxu0
    %v182 = vadd.f32 0.0, %v181
    %183 = vdwg.mxu0
    %184 = vmatprep.subr.mxu0 %v53
    %185 = vmatpush1.msra.mxu0 %v52
    %186 = vmatprep.subr.mxu0 %v57
    %187 = vmatpush1.msra.mxu0 %v56
    %188 = vmatprep.subr.mxu0 %v61
    %189 = vmatpush1.msra.mxu0 %v60
    %190 = vmatprep.subr.mxu0 %v65
    %191 = vmatpush1.msra.mxu0 %v64
    %192 = vmatprep.subr.mxu0 %v69
    %193 = vmatpush1.msra.mxu0 %v68
    %194 = vmatprep.subr.mxu0 %v73
    %195 = vmatpush1.msra.mxu0 %v72
    %196 = vmatprep.subr.mxu0 %v77
    %197 = vmatpush1.msra.mxu0 %v76
    %198 = vmatprep.subr.mxu0 %v81
    %199 = vmatpush1.msra.mxu0 %v80
    %200 = vmatprep.subr.mxu0 0.0
    %201 = vmatpush1.msra.mxu0 0.0
    %202 = vmatprep.subr.mxu0 0.0
    %203 = vmatpush1.msra.mxu0 0.0
    %204 = vmatprep.subr.mxu0 0.0
    %205 = vmatpush1.msra.mxu0 0.0
    %206 = vmatprep.subr.mxu0 0.0
    %207 = vmatpush1.msra.mxu0 0.0
    %208 = vmatprep.subr.mxu0 0.0
    %209 = vmatpush1.msra.mxu0 0.0
    %210 = vmatprep.subr.mxu0 0.0
    %211 = vmatpush1.msra.mxu0 0.0
    %212 = vmatprep.subr.mxu0 0.0
    %213 = vmatpush1.msra.mxu0 0.0
    %214 = vmatprep.subr.mxu0 0.0
    %215 = vmatpush1.msra.mxu0 0.0
    %216 = vmatprep.subr.mxu0 0.0
    %217 = vmatpush1.msra.mxu0 0.0
    %218 = vmatprep.subr.mxu0 0.0
    %219 = vmatpush1.msra.mxu0 0.0
    %220 = vmatprep.subr.mxu0 0.0
    %221 = vmatpush1.msra.mxu0 0.0
    %222 = vmatprep.subr.mxu0 0.0
    %223 = vmatpush1.msra.mxu0 0.0
    %224 = vmatprep.subr.mxu0 0.0
    %225 = vmatpush1.msra.mxu0 0.0
    %226 = vmatprep.subr.mxu0 0.0
    %227 = vmatpush1.msra.mxu0 0.0
    %228 = vmatprep.subr.mxu0 0.0
    %229 = vmatpush1.msra.mxu0 0.0
    %230 = vmatprep.subr.mxu0 0.0
    %231 = vmatpush1.msra.mxu0 0.0
    %232 = vmatprep.subr.mxu0 0.0
    %233 = vmatpush1.msra.mxu0 0.0
    %234 = vmatprep.subr.mxu0 0.0
    %235 = vmatpush1.msra.mxu0 0.0
    %236 = vmatprep.subr.mxu0 0.0
    %237 = vmatpush1.msra.mxu0 0.0
    %238 = vmatprep.subr.mxu0 0.0
    %239 = vmatpush1.msra.mxu0 0.0
    %240 = vmatprep.subr.mxu0 0.0
    %241 = vmatpush1.msra.mxu0 0.0
    %242 = vmatprep.subr.mxu0 0.0
    %243 = vmatpush1.msra.mxu0 0.0
    %244 = vmatprep.subr.mxu0 0.0
    %245 = vmatpush1.msra.mxu0 0.0
    %246 = vmatprep.subr.mxu0 0.0
    %247 = vmatpush1.msra.mxu0 0.0
    %248 = vmatprep.mubr.f32.mxu0 0.0
    %249 = vmatmul.mubr.f32.gmra.mrb[0].mxu0 %v84
    %v250 = vpop.f32.mrb[0].mxu0
    %v251 = vadd.f32 0.0, %v250
    %v252 = vpop.f32.mrb[0].mxu0
    %v253 = vadd.f32 0.0, %v252
    %254 = vmatprep.mubr.f32.mxu0 0.0
    %255 = vmatmul.mubr.f32.gmra.mrb[0].mxu0 %v87
    %v256 = vpop.f32.mrb[0].mxu0
    %v257 = vadd.f32 0.0, %v256
    %v258 = vpop.f32.mrb[0].mxu0
    %v259 = vadd.f32 0.0, %v258
    %260 = vmatprep.mubr.f32.mxu0 0.0
    %261 = vmatmul.mubr.f32.gmra.mrb[0].mxu0 %v90
    %v262 = vpop.f32.mrb[0].mxu0
    %v263 = vadd.f32 0.0, %v262
    %v264 = vpop.f32.mrb[0].mxu0
    %v265 = vadd.f32 0.0, %v264
    %266 = vmatprep.mubr.f32.mxu0 0.0
    %267 = vmatmul.mubr.f32.gmra.mrb[0].mxu0 %v93
    %v268 = vpop.f32.mrb[0].mxu0
    %v269 = vadd.f32 0.0, %v268
    %v270 = vpop.f32.mrb[0].mxu0
    %v271 = vadd.f32 0.0, %v270
    %272 = vdwg.mxu0
    %273 = vst [vmem:[#allocation7] sm:$0xff] %v162
    %274 = vst [vmem:[#allocation7 + $0x8] sm:$0xff] %v164
    %275 = vst [vmem:[#allocation7 + $0x10] sm:$0xff] %v251
    %276 = vst [vmem:[#allocation7 + $0x18] sm:$0xff] %v253
    %277 = vst [vmem:[#allocation7 + $0x20] sm:$0xff] %v168
    %278 = vst [vmem:[#allocation7 + $0x28] sm:$0xff] %v170
    %279 = vst [vmem:[#allocation7 + $0x30] sm:$0xff] %v257
    %280 = vst [vmem:[#allocation7 + $0x38] sm:$0xff] %v259
    %281 = vst [vmem:[#allocation7 + $0x40] sm:$0xff] %v174
    %282 = vst [vmem:[#allocation7 + $0x48] sm:$0xff] %v176
    %283 = vst [vmem:[#allocation7 + $0x50] sm:$0xff] %v263
    %284 = vst [vmem:[#allocation7 + $0x58] sm:$0xff] %v265
    %285 = vst [vmem:[#allocation7 + $0x60] sm:$0xff] %v180
    %286 = vst [vmem:[#allocation7 + $0x68] sm:$0xff] %v182
    %287 = vst [vmem:[#allocation7 + $0x70] sm:$0xff] %v269
    %288 = vst [vmem:[#allocation7 + $0x78] sm:$0xff] %v271
    %v289 = vld [vmem:[#allocation7] sm:$0xff]
    %v290 = vld [vmem:[#allocation7 + $0x8] sm:$0xff]
    %v291 = vld [vmem:[#allocation7 + $0x10] sm:$0xff]
    %v292 = vld [vmem:[#allocation7 + $0x18] sm:$0xff]
    %v293 = vmul.f32 %v289, %v289
    %v294 = vmul.f32 %v290, %v290
    %v295 = vmul.f32 %v291, %v291
    %v296 = vmul.f32 %v292, %v292
    %v297 = vld [vmem:[#allocation7 + $0x20] sm:$0xff]
    %v298 = vld [vmem:[#allocation7 + $0x28] sm:$0xff]
    %v299 = vld [vmem:[#allocation7 + $0x30] sm:$0xff]
    %v300 = vld [vmem:[#allocation7 + $0x38] sm:$0xff]
    %v301 = vadd.f32 %v289, %v297
    %v302 = vadd.f32 %v290, %v298
    %v303 = vadd.f32 %v291, %v299
    %v304 = vadd.f32 %v292, %v300
    %v305 = vmul.f32 %v297, %v297
    %v306 = vmul.f32 %v298, %v298
    %v307 = vmul.f32 %v299, %v299
    %v308 = vmul.f32 %v300, %v300
    %v309 = vadd.f32 %v293, %v305
    %v310 = vadd.f32 %v294, %v306
    %v311 = vadd.f32 %v295, %v307
    %v312 = vadd.f32 %v296, %v308
    %v313 = vld [vmem:[#allocation7 + $0x40] sm:$0xff]
    %v314 = vld [vmem:[#allocation7 + $0x48] sm:$0xff]
    %v315 = vld [vmem:[#allocation7 + $0x50] sm:$0xff]
    %v316 = vld [vmem:[#allocation7 + $0x58] sm:$0xff]
    %v317 = vadd.f32 %v301, %v313
    %v318 = vadd.f32 %v302, %v314
    %v319 = vadd.f32 %v303, %v315
    %v320 = vadd.f32 %v304, %v316
    %v321 = vmul.f32 %v313, %v313
    %v322 = vmul.f32 %v314, %v314
    %v323 = vmul.f32 %v315, %v315
    %v324 = vmul.f32 %v316, %v316
    %v325 = vadd.f32 %v309, %v321
    %v326 = vadd.f32 %v310, %v322
    %v327 = vadd.f32 %v311, %v323
    %v328 = vadd.f32 %v312, %v324
    %v329 = vld [vmem:[#allocation7 + $0x60] sm:$0xff]
    %v330 = vld [vmem:[#allocation7 + $0x68] sm:$0xff]
    %v331 = vld [vmem:[#allocation7 + $0x70] sm:$0xff]
    %v332 = vld [vmem:[#allocation7 + $0x78] sm:$0xff]
    %v333 = vadd.f32 %v317, %v329
    %v334 = vadd.f32 %v318, %v330
    %v335 = vadd.f32 %v319, %v331
    %v336 = vadd.f32 %v320, %v332
    %v337 = vmul.f32 %v329, %v329
    %v338 = vmul.f32 %v330, %v330
    %v339 = vmul.f32 %v331, %v331
    %v340 = vmul.f32 %v332, %v332
    %v341 = vadd.f32 %v325, %v337
    %v342 = vadd.f32 %v326, %v338
    %v343 = vadd.f32 %v327, %v339
    %v344 = vadd.f32 %v328, %v340
    %v345 = vadd.f32 %v333, %v334
    %v346 = vadd.f32 %v345, %v335
    %v347 = vadd.f32 %v346, %v336
    %348 = vadd.xlane.f32.xlu0 %v347
    %v349 = vpop.xlane.xlu0 %348
    %v350 = vmul.f32 %v349, 0.00048828125
    %v351 = vadd.f32 %v341, %v342
    %v352 = vadd.f32 %v351, %v343
    %v353 = vadd.f32 %v352, %v344
    %354 = vadd.xlane.f32.xlu0 %v353
    %v355 = vpop.xlane.xlu0 %354
    %v356 = vmul.f32 %v355, 0.00048828125
    %v357 = vmul.f32 %v350, %v350
    %v358 = vsub.f32 %v356, %v357
    %v359 = vmax.f32 %v358, 0.0
    %v360 = vld [vmem:[%s2] sm:$0xff]
    %v361 = vadd.f32 %v359, 1e-05
    %v362 = vrsqrt.pop %v361
    %v363 = vmul.f32 %v360, %v362
    %v364 = vld [vmem:[%s3] sm:$0xff]
    %v365 = vmul.f32 %v350, %v363
    %v366 = vsub.f32 %v364, %v365
    %368 = vset.pattern.permute.xlu0 0
    %369 = vperm.xlu0 %368, %v363
    %v370 = vpop.permute.xlu0 %369
    %v372 = vmul.f32 %v289, %v370
    %v373 = vmul.f32 %v290, %v370
    %v374 = vmul.f32 %v291, %v370
    %v375 = vmul.f32 %v292, %v370
    %377 = vset.pattern.permute.xlu0 0
    %378 = vperm.xlu0 %377, %v366
    %v379 = vpop.permute.xlu0 %378
    %v381 = vadd.f32 %v372, %v379
    %v382 = vadd.f32 %v373, %v379
    %v383 = vadd.f32 %v374, %v379
    %v384 = vadd.f32 %v375, %v379
    %v385 = vmax.f32 %v381, 0.0
    %v386 = vmax.f32 %v382, 0.0
    %v387 = vmax.f32 %v383, 0.0
    %v388 = vmax.f32 %v384, 0.0
    %389 = vst [vmem:[#allocation7] sm:$0xff] %v385
    %390 = vst [vmem:[#allocation7 + $0x8] sm:$0xff] %v386
    %391 = vst [vmem:[#allocation7 + $0x10] sm:$0xff] %v387
    %392 = vst [vmem:[#allocation7 + $0x18] sm:$0xff] %v388
    %v393 = vld [vmem:[#allocation7 + $0x20] sm:$0xff]
    %v394 = vld [vmem:[#allocation7 + $0x28] sm:$0xff]
    %v395 = vld [vmem:[#allocation7 + $0x30] sm:$0xff]
    %v396 = vld [vmem:[#allocation7 + $0x38] sm:$0xff]
    %v397 = vmul.f32 %v393, %v370
    %v398 = vmul.f32 %v394, %v370
    %v399 = vmul.f32 %v395, %v370
    %v400 = vmul.f32 %v396, %v370
    %v401 = vadd.f32 %v397, %v379
    %v402 = vadd.f32 %v398, %v379
    %v403 = vadd.f32 %v399, %v379
    %v404 = vadd.f32 %v400, %v379
    %v405 = vmax.f32 %v401, 0.0
    %v406 = vmax.f32 %v402, 0.0
    %v407 = vmax.f32 %v403, 0.0
    %v408 = vmax.f32 %v404, 0.0
    %409 = vst [vmem:[#allocation7 + $0x20] sm:$0xff] %v405
    %410 = vst [vmem:[#allocation7 + $0x28] sm:$0xff] %v406
    %411 = vst [vmem:[#allocation7 + $0x30] sm:$0xff] %v407
    %412 = vst [vmem:[#allocation7 + $0x38] sm:$0xff] %v408
    %v413 = vld [vmem:[#allocation7 + $0x40] sm:$0xff]
    %v414 = vld [vmem:[#allocation7 + $0x48] sm:$0xff]
    %v415 = vld [vmem:[#allocation7 + $0x50] sm:$0xff]
    %v416 = vld [vmem:[#allocation7 + $0x58] sm:$0xff]
    %v417 = vmul.f32 %v413, %v370
    %v418 = vmul.f32 %v414, %v370
    %v419 = vmul.f32 %v415, %v370
    %v420 = vmul.f32 %v416, %v370
    %v421 = vadd.f32 %v417, %v379
    %v422 = vadd.f32 %v418, %v379
    %v423 = vadd.f32 %v419, %v379
    %v424 = vadd.f32 %v420, %v379
    %v425 = vmax.f32 %v421, 0.0
    %v426 = vmax.f32 %v422, 0.0
    %v427 = vmax.f32 %v423, 0.0
    %v428 = vmax.f32 %v424, 0.0
    %429 = vst [vmem:[#allocation7 + $0x40] sm:$0xff] %v425
    %430 = vst [vmem:[#allocation7 + $0x48] sm:$0xff] %v426
    %431 = vst [vmem:[#allocation7 + $0x50] sm:$0xff] %v427
    %432 = vst [vmem:[#allocation7 + $0x58] sm:$0xff] %v428
    %v433 = vld [vmem:[#allocation7 + $0x60] sm:$0xff]
    %v434 = vld [vmem:[#allocation7 + $0x68] sm:$0xff]
    %v435 = vld [vmem:[#allocation7 + $0x70] sm:$0xff]
    %v436 = vld [vmem:[#allocation7 + $0x78] sm:$0xff]
    %v437 = vmul.f32 %v433, %v370
    %v438 = vmul.f32 %v434, %v370
    %v439 = vmul.f32 %v435, %v370
    %v440 = vmul.f32 %v436, %v370
    %v441 = vadd.f32 %v437, %v379
    %v442 = vadd.f32 %v438, %v379
    %v443 = vadd.f32 %v439, %v379
    %v444 = vadd.f32 %v440, %v379
    %v445 = vmax.f32 %v441, 0.0
    %v446 = vmax.f32 %v442, 0.0
    %v447 = vmax.f32 %v443, 0.0
    %v448 = vmax.f32 %v444, 0.0
    %449 = vst [vmem:[#allocation7 + $0x60] sm:$0xff] %v445
    %450 = vst [vmem:[#allocation7 + $0x68] sm:$0xff] %v446
    %451 = vst [vmem:[#allocation7 + $0x70] sm:$0xff] %v447
    %452 = vst [vmem:[#allocation7 + $0x78] sm:$0xff] %v448
    // Predicated region
    $region26: #{tpu_custom_call.1} parent=1 // pred_check
      _
    $region27: #{tpu_custom_call.1} parent=1 // pred_check_branch
      %454 = sbr.rel (0) target = $region29
    $region28: #{tpu_custom_call.1} parent=1 // pred_region
      %s456 = ssub.s32 2048, 2048
      %457 = vsyncadd [#allocation4], %s456
      %s458 = sshll.u32 [#allocation7], 4
      %s459 = int_to_ptr.vmem [resolvable:$true] %s458
      %464 = dma.vmem_to_hbm [thread:$0]  %s459, 2048, %s4, [#allocation4], 512, 512, 32
    $region29: #{tpu_custom_call.1} parent=1 // pred_fallthru
      _
    // Predicated region
    $region30: #{tpu_custom_call.1} parent=1 // pred_check
      _
    $region31: #{tpu_custom_call.1} parent=1 // pred_check_branch
      %466 = sbr.rel (0) target = $region33
    $region32: #{tpu_custom_call.1} parent=1 // pred_region
      %467 = dma.done [#allocation4], 2048
    $region33: #{tpu_custom_call.1} parent=1 // pred_fallthru
      _
    %468 = vsyncpa [#allocation3], 1
    %469 = vsyncpa [#allocation6], 1
    %470 = vsyncpa [#allocation4], 1

</llo_original>
